<compile_context>
chip_gen: v5e
topology: v5e:2x2
jax: 0.10.0
libtpu: 0.0.40
codegen_flags: <defaults>
</compile_context>

<pallas_src>
import jax
import jax.numpy as jnp
from jax import lax
from jax.experimental import pallas as pl
from jax.experimental.pallas import tpu as pltpu


def _rdlstm_scan_kernel(xg_ref, h0_ref, c0_ref, wh_ref,
                        h_out_ref, c_out_ref, h_scr, c_scr):
    """Process block_t timesteps for one batch tile.

    xg_ref : [block_t, Bb, 4H]  precomputed x @ Wx + b (streamed)
    wh_ref : [H, 4H]            recurrent weight, VMEM resident (const index)
    h_out_ref / c_out_ref : [block_t, Bb, H]
    h_scr / c_scr : [Bb, H] f32 carries, persist across grid steps.
    """
    t_blk = pl.program_id(1)

    # Load the initial state into the VMEM-resident carry at the first time
    # block of each batch tile's sweep.
    @pl.when(t_blk == 0)
    def _():
        h_scr[...] = h0_ref[...].astype(jnp.float32)
        c_scr[...] = c0_ref[...].astype(jnp.float32)

    H = h_scr.shape[-1]
    block_t = xg_ref.shape[0]
    wh = wh_ref[...]                       # hoisted weight load

    def step(i, carry):
        h, c = carry
        # Only the recurrent projection sits on the sequential chain:
        #   out = (x@Wx + b)[t] + h @ Wh   -> [Bb, 4H], f32 MXU accumulation.
        out = xg_ref[i].astype(jnp.float32) + jnp.dot(
            h.astype(wh.dtype), wh, preferred_element_type=jnp.float32)

        # Transcendentals only where needed (EUP slot): sigmoid over the
        # first 3H gate columns, tanh only over the last H.  Lane-aligned
        # (free) slices when H % 128 == 0; still correct otherwise.
        sig = jax.nn.sigmoid(out[:, 0:3 * H])
        gate_input = sig[:, 0 * H:1 * H]
        gate_forget = sig[:, 1 * H:2 * H]
        gate_output = sig[:, 2 * H:3 * H]
        gate_pre_c = jnp.tanh(out[:, 3 * H:4 * H]) - 1.0

        c_new = gate_forget * c + gate_input * gate_pre_c
        h_new = gate_output * jnp.tanh(c_new)

        # Lane-dense per-step stores into the [block_t, Bb, H] output slabs.
        h_out_ref[i] = h_new.astype(h_out_ref.dtype)
        c_out_ref[i] = c_new.astype(c_out_ref.dtype)
        return h_new, c_new

    h_fin, c_fin = lax.fori_loop(0, block_t, step,
                                 (h_scr[...], c_scr[...]), unroll=True)
    h_scr[...] = h_fin
    c_scr[...] = c_fin


def rdlstm_scan(x_seq, h0, c0, wx, wh, bias, *,
                block_b=None, block_t=None,
                weight_dtype=jnp.float32,
                stream_dtype=jnp.float32,
                out_dtype=None):
    """Run the RDLSTM recurrence over a full sequence in a single pallas_call.

    x_seq: [T, B, H]    h0, c0: [B, H]
    wx, wh: [H, 4H]     (split rows of PyTorch linear.weight.T)
    bias:   [4H]
    Returns (h_seq [T,B,H], c_seq [T,B,H]).
    """
    T, B, H = x_seq.shape
    assert wx.shape == (H, 4 * H) and wh.shape == (H, 4 * H)
    assert bias.shape == (4 * H,)
    if out_dtype is None:
        out_dtype = x_seq.dtype

    # Batch tiling: give v7x's second TensorCore its own "parallel" tile once
    # B is large enough to still fill the MXU (>=128 rows per tile).
    if block_b is None:
        if B >= 256 and (B // 2) % 8 == 0:
            block_b = B // 2
        else:
            block_b = B
    assert B % block_b == 0, "block_b must divide the batch"
    if block_b != B:
        assert block_b % 8 == 0, "batch tile must be sublane-aligned"
    nb = B // block_b

    # Time blocking: amortize the ~0.35 us per-grid-step overhead.
    if block_t is None:
        block_t = 8
    block_t = max(1, min(block_t, T))
    while T % block_t:          # largest divisor of T not exceeding request
        block_t -= 1
    nt = T // block_t

    wh = wh.astype(weight_dtype)

    # Hoisted, time-invariant input projection: one big [T*B,H] @ [H,4H]
    # matmul off the sequential chain (XLA-side, fills the MXU).
    xg = jnp.dot(x_seq.reshape(T * B, H).astype(weight_dtype),
                 wx.astype(weight_dtype),
                 preferred_element_type=jnp.float32,
                 precision=lax.Precision.HIGHEST)
    xg = (xg + bias.astype(jnp.float32)).reshape(T, B, 4 * H)
    xg = xg.astype(stream_dtype)

    # Explicit VMEM budget from the real footprint (weights conservatively
    # counted double-buffered, streamed slabs x2, carries, h0/c0), with
    # margin, capped at the v7x 64 MiB per-TensorCore ceiling.
    def _nb(d):
        return jnp.dtype(d).itemsize
    vmem_bytes = (
        2 * H * 4 * H * _nb(weight_dtype)                       # Wh
        + 2 * block_t * block_b * 4 * H * _nb(stream_dtype)     # xg slabs
        + 2 * 2 * block_t * block_b * H * _nb(out_dtype)        # h/c out slabs
        + 2 * 2 * block_b * H * _nb(h0.dtype)                   # h0 / c0
        + 2 * block_b * H * 4                                   # f32 carries
    )
    vmem_limit = int(min(max(4 * vmem_bytes, 16 * 1024 * 1024),
                         64 * 1024 * 1024))

    h_seq, c_seq = pl.pallas_call(
        _rdlstm_scan_kernel,
        out_shape=(jax.ShapeDtypeStruct((T, B, H), out_dtype),
                   jax.ShapeDtypeStruct((T, B, H), out_dtype)),
        grid_spec=pltpu.PrefetchScalarGridSpec(
            num_scalar_prefetch=0,
            grid=(nb, nt),
            in_specs=[
                # Precomputed x-projection: one time-block slab per grid step.
                pl.BlockSpec((block_t, block_b, 4 * H),
                             lambda b, t: (t, b, 0)),
                # Initial state: constant over t (loaded once per batch tile).
                pl.BlockSpec((block_b, H), lambda b, t: (b, 0)),
                pl.BlockSpec((block_b, H), lambda b, t: (b, 0)),
                # Recurrent weight: constant index -> resident in VMEM.
                pl.BlockSpec((H, 4 * H), lambda b, t: (0, 0)),
            ],
            out_specs=[
                pl.BlockSpec((block_t, block_b, H), lambda b, t: (t, b, 0)),
                pl.BlockSpec((block_t, block_b, H), lambda b, t: (t, b, 0)),
            ],
            scratch_shapes=[
                pltpu.VMEM((block_b, H), jnp.float32),   # h carry
                pltpu.VMEM((block_b, H), jnp.float32),   # c carry
            ],
        ),
        compiler_params=pltpu.CompilerParams(
            dimension_semantics=("parallel", "arbitrary"),
            vmem_limit_bytes=vmem_limit,
        ),
    )(xg, h0, c0, wh)

    return h_seq, c_seq


def rdlstm_cell(rnn_input, hidden_i_minus, cell_i_minus, wx, wh, bias, **kw):
    """Single-step forward matching RDLSTMCell.forward (if_dp=False)."""
    h_seq, c_seq = rdlstm_scan(rnn_input[None], hidden_i_minus, cell_i_minus,
                               wx, wh, bias, **kw)
    h_i, c_i = h_seq[0], c_seq[0]
    return h_i, (h_i, c_i)


def _orthogonal(key, shape, dtype=jnp.float32):
    """Deterministic orthogonal init matching nn.init.orthogonal_ semantics."""
    rows, cols = shape
    flat = jax.random.normal(key, (max(rows, cols), min(rows, cols)), dtype)
    q, r = jnp.linalg.qr(flat)
    q = q * jnp.sign(jnp.diagonal(r))
    if rows < cols:
        q = q.T
    return q[:rows, :cols]


def _ref_step(x, h, c, w_t, b):
    """Pure-JAX reference of one RDLSTMCell step (if_dp=False)."""
    out = jnp.dot(jnp.concatenate([x, h], axis=-1), w_t,
                  precision=lax.Precision.HIGHEST) + b
    gi, gf, go, gc = jnp.split(out, 4, axis=-1)
    gi, gf, go = jax.nn.sigmoid(gi), jax.nn.sigmoid(gf), jax.nn.sigmoid(go)
    gc = jnp.tanh(gc) - 1.0
    c_n = gf * c + gi * gc
    h_n = go * jnp.tanh(c_n)
    return h_n, c_n


if __name__ == "__main__":
    B, H, T = 8, 32, 8

    key = jax.random.PRNGKey(0)
    k_w, k_b, k_x, k_h, k_c = jax.random.split(key, 5)

    # nn.Linear(2H, 4H): weight [4H, 2H], bias [4H]
    weight = _orthogonal(k_w, (4 * H, 2 * H))
    bias = jax.random.normal(k_b, (4 * H,), jnp.float32) * 0.1
    w_t = weight.T                    # [2H, 4H]
    wx, wh = w_t[:H], w_t[H:]         # [H, 4H] each

    x_seq = jax.random.normal(k_x, (T, B, H), jnp.float32)
    h0 = jax.random.normal(k_h, (B, H), jnp.float32)
    c0 = jax.random.normal(k_c, (B, H), jnp.float32)

    # --- Single-step parity with RDLSTMCell.forward (if_dp=False) ---
    h1, (h1_dup, c1) = rdlstm_cell(x_seq[0], h0, c0, wx, wh, bias)
    jax.block_until_ready((h1, c1))
    h1_ref, c1_ref = _ref_step(x_seq[0], h0, c0, w_t, bias)
    assert jnp.allclose(h1, h1_ref, atol=2e-4), "single-step h mismatch"
    assert jnp.allclose(c1, c1_ref, atol=2e-4), "single-step c mismatch"

    # --- Fused multi-step recurrence (one pallas_call for all T steps) ---
    h_seq, c_seq = rdlstm_scan(x_seq, h0, c0, wx, wh, bias)
    jax.block_until_ready((h_seq, c_seq))

    h_r, c_r = h0, c0
    hs_ref, cs_ref = [], []
    for t in range(T):
        h_r, c_r = _ref_step(x_seq[t], h_r, c_r, w_t, bias)
        hs_ref.append(h_r)
        cs_ref.append(c_r)
    hs_ref = jnp.stack(hs_ref)
    cs_ref = jnp.stack(cs_ref)

    assert jnp.allclose(h_seq, hs_ref, atol=5e-4), "scan h mismatch"
    assert jnp.allclose(c_seq, cs_ref, atol=5e-4), "scan c mismatch"

    print("KERNEL_OK")
</pallas_src>

<mosaic_0001>
module attributes {stable_mosaic.version = 11 : i64} {
  func.func @_rdlstm_scan_kernel(%arg0: i32, %arg1: i32, %arg2: memref<1x8x128xf32, #tpu.memory_space<vmem>>, %arg3: memref<8x32xf32, #tpu.memory_space<vmem>>, %arg4: memref<8x32xf32, #tpu.memory_space<vmem>>, %arg5: memref<32x128xf32, #tpu.memory_space<vmem>>, %arg6: memref<1x8x32xf32, #tpu.memory_space<vmem>>, %arg7: memref<1x8x32xf32, #tpu.memory_space<vmem>>, %arg8: memref<8x32xf32, #tpu.memory_space<vmem>>, %arg9: memref<8x32xf32, #tpu.memory_space<vmem>>) attributes {dimension_semantics = [#tpu.dimension_semantics<parallel>, #tpu.dimension_semantics<arbitrary>], iteration_bounds = array<i64: 1, 1>, scalar_prefetch = 0 : i64, scratch_operands = 2 : i64, tpu.core_type = #tpu.core_type<tc>, window_params = [{transform_indices = @transform_0, window_bounds = array<i64: 1, 8, 128>}, {transform_indices = @transform_1, window_bounds = array<i64: 8, 32>}, {transform_indices = @transform_2, window_bounds = array<i64: 8, 32>}, {pipeline_mode = #tpu.pipeline_mode<synchronous>, transform_indices = @transform_3, window_bounds = array<i64: 32, 128>}, {transform_indices = @transform_4, window_bounds = array<i64: 1, 8, 32>}, {transform_indices = @transform_5, window_bounds = array<i64: 1, 8, 32>}]} {
    %c0_i32 = arith.constant 0 : i32
    %0 = arith.cmpi eq, %arg1, %c0_i32 : i32
    %1 = arith.extui %0 : i1 to i32
    %c0_i32_0 = arith.constant 0 : i32
    %2 = arith.cmpi ne, %1, %c0_i32_0 : i32
    scf.if %2 {
      %c0_19 = arith.constant 0 : index
      %c0_20 = arith.constant 0 : index
      %39 = vector.load %arg3[%c0_19, %c0_20] : memref<8x32xf32, #tpu.memory_space<vmem>>, vector<8x32xf32>
      %c0_21 = arith.constant 0 : index
      %c0_22 = arith.constant 0 : index
      %40 = vector.load %arg8[%c0_21, %c0_22] : memref<8x32xf32, #tpu.memory_space<vmem>>, vector<8x32xf32>
      tpu.vector_store %arg8[%c0_21, %c0_22], %39 {strides = array<i32>} : memref<8x32xf32, #tpu.memory_space<vmem>>, vector<8x32xf32>,
      %c0_23 = arith.constant 0 : index
      %c0_24 = arith.constant 0 : index
      %41 = vector.load %arg4[%c0_23, %c0_24] : memref<8x32xf32, #tpu.memory_space<vmem>>, vector<8x32xf32>
      %c0_25 = arith.constant 0 : index
      %c0_26 = arith.constant 0 : index
      %42 = vector.load %arg9[%c0_25, %c0_26] : memref<8x32xf32, #tpu.memory_space<vmem>>, vector<8x32xf32>
      tpu.vector_store %arg9[%c0_25, %c0_26], %41 {strides = array<i32>} : memref<8x32xf32, #tpu.memory_space<vmem>>, vector<8x32xf32>,
    } else {
    }
    %c0 = arith.constant 0 : index
    %c0_1 = arith.constant 0 : index
    %3 = vector.load %arg5[%c0, %c0_1] : memref<32x128xf32, #tpu.memory_space<vmem>>, vector<32x128xf32>
    %c0_2 = arith.constant 0 : index
    %c0_3 = arith.constant 0 : index
    %4 = vector.load %arg8[%c0_2, %c0_3] : memref<8x32xf32, #tpu.memory_space<vmem>>, vector<8x32xf32>
    %c0_4 = arith.constant 0 : index
    %c0_5 = arith.constant 0 : index
    %5 = vector.load %arg9[%c0_4, %c0_5] : memref<8x32xf32, #tpu.memory_space<vmem>>, vector<8x32xf32>
    %c0_i32_6 = arith.constant 0 : i32
    %6 = arith.index_cast %c0_i32_6 : i32 to index
    %c0_7 = arith.constant 0 : index
    %c0_8 = arith.constant 0 : index
    %7 = vector.load %arg2[%6, %c0_7, %c0_8] : memref<1x8x128xf32, #tpu.memory_space<vmem>>, vector<1x8x128xf32>
    %8 = vector.shape_cast %7 : vector<1x8x128xf32> to vector<8x128xf32>
    %cst = arith.constant dense<0.000000e+00> : vector<8x128xf32>
    %9 = tpu.matmul %4, %3, %cst {dimension_numbers = #tpu.dot_dimension_numbers<[1], [0], [0], [1], [0, 0, 1, 1], [], []>} : vector<8x32xf32>, vector<32x128xf32>, vector<8x128xf32> -> vector<8x128xf32>
    %10 = arith.addf %8, %9 : vector<8x128xf32>
    %11 = vector.extract_strided_slice %10 {offsets = [0, 0], sizes = [8, 96], strides = [1, 1]} : vector<8x128xf32> to vector<8x96xf32>
    %12 = arith.negf %11 : vector<8x96xf32>
    %13 = math.exp %12 : vector<8x96xf32>
    %cst_9 = arith.constant 1.000000e+00 : f32
    %14 = vector.broadcast %cst_9 : f32 to vector<8x96xf32>
    %15 = arith.addf %14, %13 : vector<8x96xf32>
    %16 = arith.divf %14, %15 : vector<8x96xf32>
    %17 = vector.extract_strided_slice %16 {offsets = [0, 0], sizes = [8, 32], strides = [1, 1]} : vector<8x96xf32> to vector<8x32xf32>
    %18 = vector.extract_strided_slice %16 {offsets = [0, 32], sizes = [8, 32], strides = [1, 1]} : vector<8x96xf32> to vector<8x32xf32>
    %19 = vector.extract_strided_slice %16 {offsets = [0, 64], sizes = [8, 32], strides = [1, 1]} : vector<8x96xf32> to vector<8x32xf32>
    %20 = vector.extract_strided_slice %10 {offsets = [0, 96], sizes = [8, 32], strides = [1, 1]} : vector<8x128xf32> to vector<8x32xf32>
    %21 = math.tanh %20 : vector<8x32xf32>
    %cst_10 = arith.constant 1.000000e+00 : f32
    %22 = vector.broadcast %cst_10 : f32 to vector<8x32xf32>
    %23 = arith.subf %21, %22 : vector<8x32xf32>
    %24 = arith.mulf %18, %5 : vector<8x32xf32>
    %25 = arith.mulf %17, %23 : vector<8x32xf32>
    %26 = arith.addf %24, %25 : vector<8x32xf32>
    %27 = math.tanh %26 : vector<8x32xf32>
    %28 = arith.mulf %19, %27 : vector<8x32xf32>
    %29 = arith.index_cast %c0_i32_6 : i32 to index
    %c0_11 = arith.constant 0 : index
    %c0_12 = arith.constant 0 : index
    %30 = vector.load %arg6[%29, %c0_11, %c0_12] : memref<1x8x32xf32, #tpu.memory_space<vmem>>, vector<1x8x32xf32>
    %31 = vector.shape_cast %30 : vector<1x8x32xf32> to vector<8x32xf32>
    %32 = vector.shape_cast %28 : vector<8x32xf32> to vector<1x8x32xf32>
    tpu.vector_store %arg6[%29, %c0_11, %c0_12], %32 {strides = array<i32>} : memref<1x8x32xf32, #tpu.memory_space<vmem>>, vector<1x8x32xf32>,
    %33 = arith.index_cast %c0_i32_6 : i32 to index
    %c0_13 = arith.constant 0 : index
    %c0_14 = arith.constant 0 : index
    %34 = vector.load %arg7[%33, %c0_13, %c0_14] : memref<1x8x32xf32, #tpu.memory_space<vmem>>, vector<1x8x32xf32>
    %35 = vector.shape_cast %34 : vector<1x8x32xf32> to vector<8x32xf32>
    %36 = vector.shape_cast %26 : vector<8x32xf32> to vector<1x8x32xf32>
    tpu.vector_store %arg7[%33, %c0_13, %c0_14], %36 {strides = array<i32>} : memref<1x8x32xf32, #tpu.memory_space<vmem>>, vector<1x8x32xf32>,
    %c1_i32 = arith.constant 1 : i32
    %c0_15 = arith.constant 0 : index
    %c0_16 = arith.constant 0 : index
    %37 = vector.load %arg8[%c0_15, %c0_16] : memref<8x32xf32, #tpu.memory_space<vmem>>, vector<8x32xf32>
    tpu.vector_store %arg8[%c0_15, %c0_16], %28 {strides = array<i32>} : memref<8x32xf32, #tpu.memory_space<vmem>>, vector<8x32xf32>,
    %c0_17 = arith.constant 0 : index
    %c0_18 = arith.constant 0 : index
    %38 = vector.load %arg9[%c0_17, %c0_18] : memref<8x32xf32, #tpu.memory_space<vmem>>, vector<8x32xf32>
    tpu.vector_store %arg9[%c0_17, %c0_18], %26 {strides = array<i32>} : memref<8x32xf32, #tpu.memory_space<vmem>>, vector<8x32xf32>,
    return
  }
  func.func @transform_0(%arg0: i32, %arg1: i32) -> (i32, i32, i32) {
    %c0_i32 = arith.constant 0 : i32
    %c0_i32_0 = arith.constant 0 : i32
    return %arg1, %arg0, %c0_i32 : i32, i32, i32
  }
  func.func @transform_1(%arg0: i32, %arg1: i32) -> (i32, i32) {
    %c0_i32 = arith.constant 0 : i32
    %c0_i32_0 = arith.constant 0 : i32
    return %arg0, %c0_i32 : i32, i32
  }
  func.func @transform_2(%arg0: i32, %arg1: i32) -> (i32, i32) {
    %c0_i32 = arith.constant 0 : i32
    %c0_i32_0 = arith.constant 0 : i32
    return %arg0, %c0_i32 : i32, i32
  }
  func.func @transform_3(%arg0: i32, %arg1: i32) -> (i32, i32) {
    %c0_i32 = arith.constant 0 : i32
    %c0_i32_0 = arith.constant 0 : i32
    %c0_i32_1 = arith.constant 0 : i32
    return %c0_i32, %c0_i32_0 : i32, i32
  }
  func.func @transform_4(%arg0: i32, %arg1: i32) -> (i32, i32, i32) {
    %c0_i32 = arith.constant 0 : i32
    %c0_i32_0 = arith.constant 0 : i32
    return %arg1, %arg0, %c0_i32 : i32, i32, i32
  }
  func.func @transform_5(%arg0: i32, %arg1: i32) -> (i32, i32, i32) {
    %c0_i32 = arith.constant 0 : i32
    %c0_i32_0 = arith.constant 0 : i32
    return %arg1, %arg0, %c0_i32 : i32, i32, i32
  }
}

</mosaic_0001>

<llo_original>
// kernel: tpu_custom_call.1
$region0: #{tpu_custom_call.1}
  #allocation0 [shape = 'u32[]', space=smem, size = 0x4, offset = 0x4, fixed_abs, tag = 'smem constant byte address 0x4 - core index']
  #allocation1 [shape = 'u32[72,128]{1,0:T(1,128)}', space=vmem, size = 0x9000, scoped, tag = 'internal scratch']
  #allocation2 [shape = 'f32[8,32]{1,0:T(8,128)}', space=vmem, size = 0x1000, scoped, tag = 'scratch operand']
  #allocation3 [shape = 'f32[8,32]{1,0:T(8,128)}', space=vmem, size = 0x1000, scoped, tag = 'scratch operand']
  %s0 = inlined_call_operand.hbm [shape: f32[1,8,128], index: 0, kind: input, shape index: {}]
  %s1 = inlined_call_operand.hbm [shape: f32[8,32], index: 1, kind: input, shape index: {}]
  %s2 = inlined_call_operand.hbm [shape: f32[8,32], index: 2, kind: input, shape index: {}]
  %s3 = inlined_call_operand.hbm [shape: f32[32,128], index: 3, kind: input, shape index: {}]
  %s4 = inlined_call_operand.hbm [shape: f32[1,8,32], index: 4, kind: output, shape index: {0}]
  %s5 = inlined_call_operand.hbm [shape: f32[1,8,32], index: 5, kind: output, shape index: {1}]
  %6 = xla_tuple %s4, %s5
  %s7 = sld [smem:[#allocation0]]
  $region54: #{tpu_custom_call.1} parent=0
    _
  %s9 = ssub.s32 1, %s7
  %s10 = scalar_select 0, %s9, %s7
  $region1: #{tpu_custom_call.1} parent=0
    #allocation4 [shape = 'u8[4096]{0}', space=vmem, size = 0x1000, scoped, tag = 'input window, operand 0, single buffered']
    #allocation5 [shape = 's32[1]{0}', space=sflag, size = 0x4, scoped, tag = 'scoped memory for tpu_custom_call.1']
    #allocation6 [shape = 's32[1]{0}', space=sflag, size = 0x4, scoped, tag = 'scoped memory for tpu_custom_call.1']
    #allocation7 [shape = 'u8[4096]{0}', space=vmem, size = 0x1000, scoped, tag = 'input window, operand 1, single buffered']
    #allocation8 [shape = 's32[1]{0}', space=sflag, size = 0x4, scoped, tag = 'scoped memory for tpu_custom_call.1']
    #allocation9 [shape = 'u8[4096]{0}', space=vmem, size = 0x1000, scoped, tag = 'input window, operand 2, single buffered']
    #allocation10 [shape = 'u8[16384]{0}', space=vmem, size = 0x4000, scoped, tag = 'input window, operand 3, single buffered']
    #allocation11 [shape = 's32[1]{0}', space=sflag, size = 0x4, scoped, tag = 'scoped memory for tpu_custom_call.1']
    #allocation12 [shape = 'u8[4096]{0}', space=vmem, size = 0x1000, scoped, tag = 'output window, operand 0, single buffered']
    #allocation13 [shape = 'u8[4096]{0}', space=vmem, size = 0x1000, scoped, tag = 'output window, operand 1, single buffered']
    #allocation14 [shape = 's32[1]{0}', space=sflag, size = 0x4, scoped, tag = 'scoped memory for tpu_custom_call.1']
    %11 = vsyncpa [#allocation5], 0
    %12 = vsyncpa [#allocation8], 0
    %13 = vsyncpa [#allocation11], 0
    %14 = vsyncpa [#allocation6], 0
    %15 = vsyncpa [#allocation14], 0
    // Predicated region
    $region2: #{tpu_custom_call.1} parent=1 // pred_check
      _
    $region3: #{tpu_custom_call.1} parent=1 // pred_check_branch
      %17 = sbr.rel (0) target = $region5
    $region4: #{tpu_custom_call.1} parent=1 // pred_region
      %19 = vsyncadd [#allocation5], 0
      %s21 = sshll.u32 %s0, 4
      %s22 = int_to_ptr.hbm [resolvable:$true] %s21
      %s23 = sshll.u32 [#allocation4], 4
      %s24 = int_to_ptr.vmem [resolvable:$true] %s23
      %26 = dma.hbm_to_vmem [thread:$0]  %s22, 128, %s24, [#allocation5]
    $region5: #{tpu_custom_call.1} parent=1 // pred_fallthru
      _
    // Predicated region
    $region6: #{tpu_custom_call.1} parent=1 // pred_check
      _
    $region7: #{tpu_custom_call.1} parent=1 // pred_check_branch
      %28 = sbr.rel (0) target = $region9
    $region8: #{tpu_custom_call.1} parent=1 // pred_region
      %30 = vsyncadd [#allocation8], 0
      %s32 = sshll.u32 %s1, 4
      %s33 = int_to_ptr.hbm [resolvable:$true] %s32
      %s34 = sshll.u32 [#allocation7], 4
      %s35 = int_to_ptr.vmem [resolvable:$true] %s34
      %37 = dma.hbm_to_vmem [thread:$0]  %s33, 128, %s35, [#allocation8]
    $region9: #{tpu_custom_call.1} parent=1 // pred_fallthru
      _
    // Predicated region
    $region10: #{tpu_custom_call.1} parent=1 // pred_check
      _
    $region11: #{tpu_custom_call.1} parent=1 // pred_check_branch
      %39 = sbr.rel (0) target = $region13
    $region12: #{tpu_custom_call.1} parent=1 // pred_region
      %41 = vsyncadd [#allocation8], 0
      %s43 = sshll.u32 %s2, 4
      %s44 = int_to_ptr.hbm [resolvable:$true] %s43
      %s45 = sshll.u32 [#allocation9], 4
      %s46 = int_to_ptr.vmem [resolvable:$true] %s45
      %48 = dma.hbm_to_vmem [thread:$0]  %s44, 128, %s46, [#allocation8]
    $region13: #{tpu_custom_call.1} parent=1 // pred_fallthru
      _
    // Predicated region
    $region14: #{tpu_custom_call.1} parent=1 // pred_check
      _
    $region15: #{tpu_custom_call.1} parent=1 // pred_check_branch
      %50 = sbr.rel (0) target = $region17
    $region16: #{tpu_custom_call.1} parent=1 // pred_region
      %52 = vsyncadd [#allocation11], 0
      %s53 = sshll.u32 %s3, 4
      %s54 = int_to_ptr.hbm [resolvable:$true] %s53
      %s55 = sshll.u32 [#allocation10], 4
      %s56 = int_to_ptr.vmem [resolvable:$true] %s55
      %61 = dma.hbm_to_vmem [thread:$0]  %s54, 512, %s56, [#allocation11], 128, 128, 8
    $region17: #{tpu_custom_call.1} parent=1 // pred_fallthru
      _
    // Predicated region
    $region18: #{tpu_custom_call.1} parent=1 // pred_check
      _
    $region19: #{tpu_custom_call.1} parent=1 // pred_check_branch
      %63 = sbr.rel (0) target = $region21
    $region20: #{tpu_custom_call.1} parent=1 // pred_region
      %65 = dma.done [#allocation5], 128
    $region21: #{tpu_custom_call.1} parent=1 // pred_fallthru
      _
    // Predicated region
    $region22: #{tpu_custom_call.1} parent=1 // pred_check
      _
    $region23: #{tpu_custom_call.1} parent=1 // pred_check_branch
      %67 = sbr.rel (0) target = $region25
    $region24: #{tpu_custom_call.1} parent=1 // pred_region
      %69 = dma.done [#allocation8], 128
    $region25: #{tpu_custom_call.1} parent=1 // pred_fallthru
      _
    // Predicated region
    $region26: #{tpu_custom_call.1} parent=1 // pred_check
      _
    $region27: #{tpu_custom_call.1} parent=1 // pred_check_branch
      %71 = sbr.rel (0) target = $region29
    $region28: #{tpu_custom_call.1} parent=1 // pred_region
      %73 = dma.done [#allocation8], 128
    $region29: #{tpu_custom_call.1} parent=1 // pred_fallthru
      _
    // Predicated region
    $region30: #{tpu_custom_call.1} parent=1 // pred_check
      _
    $region31: #{tpu_custom_call.1} parent=1 // pred_check_branch
      %75 = sbr.rel (0) target = $region33
    $region32: #{tpu_custom_call.1} parent=1 // pred_region
      %77 = dma.done [#allocation11], 512
    $region33: #{tpu_custom_call.1} parent=1 // pred_fallthru
      _
    %p78 = scmp.eq.s32.totalorder 0, 0
    // Predicated region
    $region34: #{tpu_custom_call.1} parent=1 // pred_check
      %p79 = pneg %p78
    $region35: #{tpu_custom_call.1} parent=1 // pred_check_branch
      %81 = sbr.rel (%p79) target = $region37
    $region36: #{tpu_custom_call.1} parent=1 // pred_region
      %v82 = vld [vmem:[#allocation7] sm:$0xff]
      %vm83 = vcmask 261120
      %84 = vst.msk [vmem:[#allocation2] sm:$0xff] %vm83, %v82
      %v85 = vld [vmem:[#allocation9] sm:$0xff]
      %86 = vst.msk [vmem:[#allocation3] sm:$0xff] %vm83, %v85
    $region37: #{tpu_custom_call.1} parent=1 // pred_fallthru
      _
    %v87 = vld [vmem:[#allocation10] sm:$0xff]
    %v88 = vld [vmem:[#allocation10 + $0x8] sm:$0xff]
    %v89 = vld [vmem:[#allocation10 + $0x10] sm:$0xff]
    %v90 = vld [vmem:[#allocation10 + $0x18] sm:$0xff]
    %v91 = vld [vmem:[#allocation2] sm:$0xff]
    %v92 = vld [vmem:[#allocation3] sm:$0xff]
    %v93 = vld [vmem:[#allocation4] sm:$0xff]
    %vm94 = vcmask 261120
    %v96 = vsel %vm94, %v91, 0
    %98 = vmatpush.msra.mxu0 0.0
    %99 = vmatpush.msra.mxu0 0.0
    %100 = vmatpush.msra.mxu0 0.0
    %101 = vmatpush.msra.mxu0 0.0
    %102 = vmatpush.msra.mxu0 0.0
    %103 = vmatpush.msra.mxu0 0.0
    %104 = vmatpush.msra.mxu0 0.0
    %105 = vmatpush.msra.mxu0 0.0
    %106 = vmatpush.msra.mxu0 0.0
    %107 = vmatpush.msra.mxu0 0.0
    %108 = vmatpush.msra.mxu0 0.0
    %109 = vmatpush.msra.mxu0 0.0
    %110 = vmatpush.msra.mxu0 %v90
    %111 = vmatpush.msra.mxu0 %v89
    %112 = vmatpush.msra.mxu0 %v88
    %113 = vmatpush.msra.mxu0 %v87
    %114 = vmatmul.f32.gmra.mxu0 %v96
    %v115 = vpop.f32.mrf.mxu0
    %v116 = vadd.f32 0.0, %v115
    %117 = vdwg.mxu0
    %v118 = vadd.f32 %v93, %v116
    %v119 = vxor.u32 %v118, 2147483648
    %v120 = vmul.f32 %v119, 1.442695
    %v121 = vpow.pop %v120
    %v122 = vadd.f32 %v121, 1.0
    %v123 = vrcp.pop %v122
    %v124 = vmul.f32 %v122, %v123
    %v125 = vsub.f32 1.0, %v124
    %v126 = vmul.f32 %v123, %v125
    %v127 = vadd.f32 %v123, %v126
    %vm128 = vweird.f32 %v122
    %vm129 = vweird.f32 %v123
    %vm130 = vmor %vm128, %vm129
    %v131 = vsel %vm130, %v123, %v127
    %v132 = vand.u32 2147483647, %v122
    %vm133 = vcmp.eq.f32.partialorder %v132, 8.507059e+37
    %v134 = vand.u32 %v122, 2147483648
    %v135 = vor.u32 1.1754944e-38, %v134
    %v136 = vsel %vm133, %v135, %v131
    %v137 = vmul.f32 1.0, %v136
    %v138 = vtanh.pop %v118
    %v139 = vsub.f32 %v138, 1.0
    %141 = vrot.lane.b32.xlu0 %v92, 32
    %v142 = vpop.permute.xlu0 %141
    %v144 = vmul.f32 %v137, %v142
    %146 = vrot.lane.b32.xlu0 %v139, 32
    %v147 = vpop.permute.xlu0 %146
    %v149 = vmul.f32 %v137, %v147
    %151 = vrot.lane.b32.xlu0 %v149, 32
    %v152 = vpop.permute.xlu0 %151
    %v154 = vadd.f32 %v144, %v152
    %v155 = vtanh.pop %v154
    %157 = vrot.lane.b32.xlu0 %v155, 32
    %v158 = vpop.permute.xlu0 %157
    %v160 = vmul.f32 %v137, %v158
    %162 = vrot.lane.b32.xlu0 %v160, 64
    %v163 = vpop.permute.xlu0 %162
    %165 = vst.msk [vmem:[#allocation12] sm:$0xff] %vm94, %v163
    %167 = vrot.lane.b32.xlu0 %v154, 96
    %v168 = vpop.permute.xlu0 %167
    %170 = vst.msk [vmem:[#allocation13] sm:$0xff] %vm94, %v168
    %171 = vst.msk [vmem:[#allocation2] sm:$0xff] %vm94, %v163
    %172 = vst.msk [vmem:[#allocation3] sm:$0xff] %vm94, %v168
    // Predicated region
    $region38: #{tpu_custom_call.1} parent=1 // pred_check
      _
    $region39: #{tpu_custom_call.1} parent=1 // pred_check_branch
      %174 = sbr.rel (0) target = $region41
    $region40: #{tpu_custom_call.1} parent=1 // pred_region
      %176 = vsyncadd [#allocation6], 0
      %s178 = sshll.u32 [#allocation12], 4
      %s179 = int_to_ptr.vmem [resolvable:$true] %s178
      %s180 = sshll.u32 %s4, 4
      %s181 = int_to_ptr.hbm [resolvable:$true] %s180
      %183 = dma.vmem_to_hbm [thread:$0]  %s179, 128, %s181, [#allocation6]
    $region41: #{tpu_custom_call.1} parent=1 // pred_fallthru
      _
    // Predicated region
    $region42: #{tpu_custom_call.1} parent=1 // pred_check
      _
    $region43: #{tpu_custom_call.1} parent=1 // pred_check_branch
      %185 = sbr.rel (0) target = $region45
    $region44: #{tpu_custom_call.1} parent=1 // pred_region
      %187 = vsyncadd [#allocation14], 0
      %s189 = sshll.u32 [#allocation13], 4
      %s190 = int_to_ptr.vmem [resolvable:$true] %s189
      %s191 = sshll.u32 %s5, 4
      %s192 = int_to_ptr.hbm [resolvable:$true] %s191
      %194 = dma.vmem_to_hbm [thread:$0]  %s190, 128, %s192, [#allocation14]
    $region45: #{tpu_custom_call.1} parent=1 // pred_fallthru
      _
    // Predicated region
    $region46: #{tpu_custom_call.1} parent=1 // pred_check
      _
    $region47: #{tpu_custom_call.1} parent=1 // pred_check_branch
      %196 = sbr.rel (0) target = $region49
    $region48: #{tpu_custom_call.1} parent=1 // pred_region
      %198 = dma.done [#allocation6], 128
    $region49: #{tpu_custom_call.1} parent=1 // pred_fallthru
      _
    // Predicated region
    $region50: #{tpu_custom_call.1} parent=1 // pred_check
      _
    $region51: #{tpu_custom_call.1} parent=1 // pred_check_branch
      %200 = sbr.rel (0) target = $region53
    $region52: #{tpu_custom_call.1} parent=1 // pred_region
      %202 = dma.done [#allocation14], 128
    $region53: #{tpu_custom_call.1} parent=1 // pred_fallthru
      _
    %203 = vsyncpa [#allocation5], 1
    %204 = vsyncpa [#allocation8], 1
    %205 = vsyncpa [#allocation11], 1
    %206 = vsyncpa [#allocation6], 1
    %207 = vsyncpa [#allocation14], 1

</llo_original>
